<compile_context>
chip_gen: v6e
topology: v6e:2x2x1
jax: 0.10.0
libtpu: 0.0.40
codegen_flags: <defaults>
</compile_context>

<pallas_src>
import math
from functools import partial

import jax
import jax.numpy as jnp
from jax.experimental import pallas as pl
from jax.experimental.pallas import tpu as pltpu

PAD = 0            # config.PAD
NEG_INF = -1e30    # additive mask value (finite to keep softmax NaN-free)


# ---------------------------------------------------------------------------
# Small helpers
# ---------------------------------------------------------------------------
def _round_up(x, m):
    return (x + m - 1) // m * m


def _row_tile(r):
    """Pick (row_tile, padded_rows) for row-tiled (token) kernels."""
    if r >= 256:
        return 256, _round_up(r, 256)
    r8 = _round_up(r, 8)
    return r8, r8


def _q_tile(s):
    if s >= 256 and s % 256 == 0:
        return 256
    return s


def _vocab_tile(vp):  # vp is already a multiple of 128
    for t in (1024, 512, 256, 128):
        if vp % t == 0:
            return t
    return vp


def _const_spec(shape):
    """Full-array block, constant index_map: stays VMEM-resident across the grid."""
    n = len(shape)
    return pl.BlockSpec(shape, lambda *args: (0,) * n)


# ---------------------------------------------------------------------------
# In-kernel math (traced inside the Pallas kernels)
# ---------------------------------------------------------------------------
def _layer_norm(x, w, b, eps=1e-5):
    mu = jnp.mean(x, axis=-1, keepdims=True)
    var = jnp.mean((x - mu) ** 2, axis=-1, keepdims=True)
    return (x - mu) * jax.lax.rsqrt(var + eps) * w + b


def _gelu(x):
    # exact (erf) GELU, matching PyTorch activation='gelu'
    return 0.5 * x * (1.0 + jax.lax.erf(x / math.sqrt(2.0)))


# ---------------------------------------------------------------------------
# Pallas kernels
# ---------------------------------------------------------------------------
def _qkv_kernel(x_ref, w_ref, b_ref, o_ref):
    """Fused QKV projection for one row tile: [TM, D] @ [D, 3D] (bf16 -> f32 acc)."""
    x = x_ref[...].astype(jnp.bfloat16)
    y = jnp.dot(x, w_ref[...], preferred_element_type=jnp.float32) + b_ref[...]
    o_ref[...] = y.astype(o_ref.dtype)


def _attn_kernel(scale, q_ref, k_ref, v_ref, padb_ref, o_ref):
    """Scaled dot-product attention for one (batch, head, q-tile) block.

    Causal mask is generated in-kernel from iota; key-padding bias comes in as a
    tiny [1, S] additive row.  Softmax stats in f32, matmuls in bf16.
    """
    tq, hd = q_ref.shape[2], q_ref.shape[3]
    s = k_ref.shape[2]

    q = q_ref[0, 0]            # [TQ, Hd] bf16
    k = k_ref[0, 0]            # [S,  Hd] bf16
    v = v_ref[0, 0]            # [S,  Hd] bf16

    # q @ k^T without an explicit transpose (contract last dims of both).
    scores = jax.lax.dot_general(
        q, k, (((1,), (1,)), ((), ())),
        preferred_element_type=jnp.float32) * scale          # [TQ, S] f32

    q0 = pl.program_id(2) * tq
    row = jax.lax.broadcasted_iota(jnp.int32, (tq, s), 0) + q0
    col = jax.lax.broadcasted_iota(jnp.int32, (tq, s), 1)
    bias = jnp.where(col > row, jnp.float32(NEG_INF), jnp.float32(0.0))
    bias = bias + padb_ref[0]                                 # + key-padding [1, S]
    scores = scores + bias

    scores = scores - jnp.max(scores, axis=-1, keepdims=True)
    p = jnp.exp(scores)
    p = p * pl.reciprocal(jnp.sum(p, axis=-1, keepdims=True), approx=True)

    out = jnp.dot(p.astype(v.dtype), v, preferred_element_type=jnp.float32)
    o_ref[0, 0] = out.astype(o_ref.dtype)


def _post_attn_kernel(a_ref, x_ref, wo_ref, bo_ref, ln1w_ref, ln1b_ref,
                      w1_ref, b1_ref, w2_ref, b2_ref, ln2w_ref, ln2b_ref, o_ref):
    """Output projection + residual + LN1 + GELU FFN + residual + LN2 (post-norm)."""
    proj = jnp.dot(a_ref[...], wo_ref[...],
                   preferred_element_type=jnp.float32) + bo_ref[...]
    y = _layer_norm(x_ref[...] + proj, ln1w_ref[...], ln1b_ref[...])

    h = _gelu(jnp.dot(y.astype(jnp.bfloat16), w1_ref[...],
                      preferred_element_type=jnp.float32) + b1_ref[...])
    f = jnp.dot(h.astype(jnp.bfloat16), w2_ref[...],
                preferred_element_type=jnp.float32) + b2_ref[...]
    o_ref[...] = _layer_norm(y + f, ln2w_ref[...], ln2b_ref[...]).astype(o_ref.dtype)


def _lm_head_kernel(x_ref, lnw_ref, lnb_ref, w_ref, b_ref, o_ref):
    """Final LayerNorm (TransformerEncoder norm) + LM head tile [TM, D]x[D, TV]."""
    y = _layer_norm(x_ref[...], lnw_ref[...], lnb_ref[...])
    out = jnp.dot(y.astype(jnp.bfloat16), w_ref[...],
                  preferred_element_type=jnp.float32) + b_ref[...]
    o_ref[...] = out.astype(o_ref.dtype)


# ---------------------------------------------------------------------------
# pallas_call wrappers
# ---------------------------------------------------------------------------
def _qkv_proj(x, w, b, tm):
    rp, d = x.shape
    d3 = w.shape[1]
    return pl.pallas_call(
        _qkv_kernel,
        grid=(rp // tm,),
        in_specs=[pl.BlockSpec((tm, d), lambda i: (i, 0)),
                  _const_spec(w.shape),
                  _const_spec(b.shape)],
        out_specs=pl.BlockSpec((tm, d3), lambda i: (i, 0)),
        out_shape=jax.ShapeDtypeStruct((rp, d3), jnp.bfloat16),
        compiler_params=pltpu.CompilerParams(dimension_semantics=("parallel",)),
    )(x, w, b)


def _attention(q, k, v, padb, scale):
    b, h, s, hd = q.shape
    tq = _q_tile(s)
    spec_q = pl.BlockSpec((1, 1, tq, hd), lambda bi, hi, qi: (bi, hi, qi, 0))
    spec_kv = pl.BlockSpec((1, 1, s, hd), lambda bi, hi, qi: (bi, hi, 0, 0))
    spec_pd = pl.BlockSpec((1, 1, s), lambda bi, hi, qi: (bi, 0, 0))
    return pl.pallas_call(
        partial(_attn_kernel, scale),
        grid=(b, h, s // tq),
        in_specs=[spec_q, spec_kv, spec_kv, spec_pd],
        out_specs=spec_q,
        out_shape=jax.ShapeDtypeStruct((b, h, s, hd), jnp.bfloat16),
        compiler_params=pltpu.CompilerParams(
            dimension_semantics=("parallel", "parallel", "parallel")),
    )(q, k, v, padb)


def _post_attn(a, x, lw, tm):
    rp, d = x.shape
    args = (a, x, lw['wo'], lw['bo'], lw['ln1w'], lw['ln1b'],
            lw['w1'], lw['b1'], lw['w2'], lw['b2'], lw['ln2w'], lw['ln2b'])
    in_specs = [pl.BlockSpec((tm, d), lambda i: (i, 0)),
                pl.BlockSpec((tm, d), lambda i: (i, 0))]
    in_specs += [_const_spec(w.shape) for w in args[2:]]
    return pl.pallas_call(
        _post_attn_kernel,
        grid=(rp // tm,),
        in_specs=in_specs,
        out_specs=pl.BlockSpec((tm, d), lambda i: (i, 0)),
        out_shape=jax.ShapeDtypeStruct((rp, d), jnp.float32),
        compiler_params=pltpu.CompilerParams(dimension_semantics=("parallel",)),
    )(*args)


def _lm_head(x, lnw, lnb, w, b, tm):
    rp, d = x.shape
    vp = w.shape[1]
    tv = _vocab_tile(vp)
    return pl.pallas_call(
        _lm_head_kernel,
        grid=(rp // tm, vp // tv),
        in_specs=[pl.BlockSpec((tm, d), lambda i, j: (i, 0)),
                  pl.BlockSpec((1, d), lambda i, j: (0, 0)),
                  pl.BlockSpec((1, d), lambda i, j: (0, 0)),
                  pl.BlockSpec((d, tv), lambda i, j: (0, j)),
                  pl.BlockSpec((1, tv), lambda i, j: (0, j))],
        out_specs=pl.BlockSpec((tm, tv), lambda i, j: (i, j)),
        out_shape=jax.ShapeDtypeStruct((rp, vp), jnp.float32),
        compiler_params=pltpu.CompilerParams(
            dimension_semantics=("parallel", "parallel")),
    )(x, lnw, lnb, w, b)


# ---------------------------------------------------------------------------
# Full forward pass (glue: embedding gather, head split/merge, row/vocab padding)
# ---------------------------------------------------------------------------
def gpt_forward(tokens, params, nhead):
    b, s = tokens.shape
    d = params['embed'].shape[1]
    h = nhead
    hd = d // h
    r = b * s
    tm, rp = _row_tile(r)
    scale = 1.0 / math.sqrt(hd)

    # embedding lookup + learned positional embedding (XLA glue gather/add)
    x = jnp.take(params['embed'], tokens, axis=0) + params['pos_embed'][None, :s, :]
    x = x.reshape(r, d).astype(jnp.float32)
    if rp != r:
        x = jnp.pad(x, ((0, rp - r), (0, 0)))

    # key-padding additive bias [B, 1, S]; causal part is generated in-kernel
    padb = jnp.where(tokens == PAD, jnp.float32(NEG_INF), jnp.float32(0.0))[:, None, :]

    for lw in params['layers']:
        qkv = _qkv_proj(x, lw['wqkv'], lw['bqkv'], tm)            # [rp, 3D] bf16
        qkv = qkv[:r]
        q = qkv[:, 0:d].reshape(b, s, h, hd).transpose(0, 2, 1, 3)
        k = qkv[:, d:2 * d].reshape(b, s, h, hd).transpose(0, 2, 1, 3)
        v = qkv[:, 2 * d:3 * d].reshape(b, s, h, hd).transpose(0, 2, 1, 3)

        a = _attention(q, k, v, padb, scale)                      # [B,H,S,Hd] bf16
        a = a.transpose(0, 2, 1, 3).reshape(r, d)
        if rp != r:
            a = jnp.pad(a, ((0, rp - r), (0, 0)))

        x = _post_attn(a, x, lw, tm)                              # [rp, D] f32

    logits = _lm_head(x, params['final_lnw'], params['final_lnb'],
                      params['wout'], params['bout'], tm)         # [rp, Vpad] f32
    v_real = params['vocab']
    return logits[:r, :v_real].reshape(b, s, v_real)


# ---------------------------------------------------------------------------
# Deterministic parameter initialization (shapes from GPT.__init__)
# ---------------------------------------------------------------------------
def init_params(key, vocab, max_len, d_model, nhead, dff, num_layers):
    def nrm(k, shape, scl):
        return jax.random.normal(k, shape, jnp.float32) * scl

    s_in = 1.0 / math.sqrt(d_model)
    s_ff = 1.0 / math.sqrt(dff)
    vpad = _round_up(vocab, 128)

    keys = jax.random.split(key, 3 + num_layers)
    p = {
        'vocab': vocab,
        'embed': nrm(keys[0], (vocab, d_model), 1.0),             # nn.Embedding
        'pos_embed': nrm(keys[1], (max_len, d_model), 0.1),       # randn/10
    }
    layers = []
    for i in range(num_layers):
        lk = jax.random.split(keys[2 + i], 4)
        layers.append(dict(
            wqkv=nrm(lk[0], (d_model, 3 * d_model), s_in).astype(jnp.bfloat16),
            bqkv=jnp.zeros((1, 3 * d_model), jnp.float32),
            wo=nrm(lk[1], (d_model, d_model), s_in).astype(jnp.bfloat16),
            bo=jnp.zeros((1, d_model), jnp.float32),
            ln1w=jnp.ones((1, d_model), jnp.float32),
            ln1b=jnp.zeros((1, d_model), jnp.float32),
            w1=nrm(lk[2], (d_model, dff), s_in).astype(jnp.bfloat16),
            b1=jnp.zeros((1, dff), jnp.float32),
            w2=nrm(lk[3], (dff, d_model), s_ff).astype(jnp.bfloat16),
            b2=jnp.zeros((1, d_model), jnp.float32),
            ln2w=jnp.ones((1, d_model), jnp.float32),
            ln2b=jnp.zeros((1, d_model), jnp.float32),
        ))
    p['layers'] = layers
    p['final_lnw'] = jnp.ones((1, d_model), jnp.float32)          # TransformerEncoder norm
    p['final_lnb'] = jnp.zeros((1, d_model), jnp.float32)
    wout = nrm(keys[2 + num_layers], (d_model, vocab), s_in)      # FINAL_ffn
    p['wout'] = jnp.pad(wout, ((0, 0), (0, vpad - vocab))).astype(jnp.bfloat16)
    p['bout'] = jnp.zeros((1, vpad), jnp.float32)
    return p


if __name__ == "__main__":
    VOCAB, MAX_LEN, D_MODEL, NHEAD, DFF, NLAYERS, BATCH = 50, 8, 32, 4, 64, 2, 2

    key = jax.random.PRNGKey(0)
    pkey, tkey = jax.random.split(key)
    params = init_params(pkey, VOCAB, MAX_LEN, D_MODEL, NHEAD, DFF, NLAYERS)

    # tokens in [1, VOCAB); add trailing PAD tokens to exercise the padding mask.
    tokens = jax.random.randint(tkey, (BATCH, MAX_LEN), 1, VOCAB, dtype=jnp.int32)
    tokens = tokens.at[1, -2:].set(PAD)

    logits = gpt_forward(tokens, params, NHEAD)
    jax.block_until_ready(logits)

    assert logits.shape == (BATCH, MAX_LEN, VOCAB)
    assert bool(jnp.all(jnp.isfinite(logits)))
    print("KERNEL_OK")
</pallas_src>

<mosaic_0001>
module attributes {stable_mosaic.version = 11 : i64} {
  func.func @_qkv_kernel(%arg0: i32, %arg1: memref<16x32xf32, #tpu.memory_space<vmem>>, %arg2: memref<32x96xbf16, #tpu.memory_space<vmem>>, %arg3: memref<1x96xf32, #tpu.memory_space<vmem>>, %arg4: memref<16x96xbf16, #tpu.memory_space<vmem>>) attributes {dimension_semantics = [#tpu.dimension_semantics<parallel>], iteration_bounds = array<i64: 1>, scalar_prefetch = 0 : i64, scratch_operands = 0 : i64, tpu.core_type = #tpu.core_type<tc>, window_params = [{transform_indices = @transform_0, window_bounds = array<i64: 16, 32>}, {pipeline_mode = #tpu.pipeline_mode<synchronous>, transform_indices = @transform_1, window_bounds = array<i64: 32, 96>}, {pipeline_mode = #tpu.pipeline_mode<synchronous>, transform_indices = @transform_2, window_bounds = array<i64: 1, 96>}, {transform_indices = @transform_3, window_bounds = array<i64: 16, 96>}]} {
    %c0 = arith.constant 0 : index
    %c0_0 = arith.constant 0 : index
    %0 = vector.load %arg1[%c0, %c0_0] : memref<16x32xf32, #tpu.memory_space<vmem>>, vector<16x32xf32>
    %1 = arith.truncf %0 : vector<16x32xf32> to vector<16x32xbf16>
    %c0_1 = arith.constant 0 : index
    %c0_2 = arith.constant 0 : index
    %2 = vector.load %arg2[%c0_1, %c0_2] : memref<32x96xbf16, #tpu.memory_space<vmem>>, vector<32x96xbf16>
    %cst = arith.constant dense<0.000000e+00> : vector<16x96xf32>
    %3 = tpu.matmul %1, %2, %cst {dimension_numbers = #tpu.dot_dimension_numbers<[1], [0], [0], [1], [0, 0, 1, 1], [], []>} : vector<16x32xbf16>, vector<32x96xbf16>, vector<16x96xf32> -> vector<16x96xf32>
    %c0_3 = arith.constant 0 : index
    %c0_4 = arith.constant 0 : index
    %4 = vector.load %arg3[%c0_3, %c0_4] : memref<1x96xf32, #tpu.memory_space<vmem>>, vector<1x96xf32>
    %5 = vector.broadcast %4 : vector<1x96xf32> to vector<16x96xf32>
    %6 = arith.addf %3, %5 : vector<16x96xf32>
    %7 = arith.truncf %6 : vector<16x96xf32> to vector<16x96xbf16>
    %c0_5 = arith.constant 0 : index
    %c0_6 = arith.constant 0 : index
    %8 = vector.load %arg4[%c0_5, %c0_6] : memref<16x96xbf16, #tpu.memory_space<vmem>>, vector<16x96xbf16>
    tpu.vector_store %arg4[%c0_5, %c0_6], %7 {strides = array<i32>} : memref<16x96xbf16, #tpu.memory_space<vmem>>, vector<16x96xbf16>,
    return
  }
  func.func @transform_0(%arg0: i32) -> (i32, i32) {
    %c0_i32 = arith.constant 0 : i32
    %c0_i32_0 = arith.constant 0 : i32
    return %arg0, %c0_i32 : i32, i32
  }
  func.func @transform_1(%arg0: i32) -> (i32, i32) {
    %c0_i32 = arith.constant 0 : i32
    %c0_i32_0 = arith.constant 0 : i32
    %c0_i32_1 = arith.constant 0 : i32
    return %c0_i32, %c0_i32_0 : i32, i32
  }
  func.func @transform_2(%arg0: i32) -> (i32, i32) {
    %c0_i32 = arith.constant 0 : i32
    %c0_i32_0 = arith.constant 0 : i32
    %c0_i32_1 = arith.constant 0 : i32
    return %c0_i32, %c0_i32_0 : i32, i32
  }
  func.func @transform_3(%arg0: i32) -> (i32, i32) {
    %c0_i32 = arith.constant 0 : i32
    %c0_i32_0 = arith.constant 0 : i32
    return %arg0, %c0_i32 : i32, i32
  }
}

</mosaic_0001>

<llo_original>
// kernel: tpu_custom_call.1
$region0: #{tpu_custom_call.1}
  #allocation0 [shape = 'u32[]', space=smem, size = 0x4, offset = 0x4, fixed_abs, tag = 'smem constant byte address 0x4 - core index']
  #allocation1 [shape = 'u32[144,128]{1,0:T(1,128)}', space=vmem, size = 0x12000, scoped, tag = 'internal scratch']
  %s0 = inlined_call_operand.hbm [shape: f32[16,32], index: 0, kind: input, shape index: {}]
  %s1 = inlined_call_operand.hbm [shape: bf16[32,96], index: 1, kind: input, shape index: {}]
  %s2 = inlined_call_operand.vmem [shape: f32[1,96], index: 2, kind: input, shape index: {}]
  %s3 = inlined_call_operand.hbm [shape: bf16[16,96], index: 3, kind: output, shape index: {}]
  %s4 = sld [smem:[#allocation0]]
  $region30: #{tpu_custom_call.1} parent=0
    _
  %s6 = ssub.s32 1, %s4
  %s7 = scalar_select 0, %s6, %s4
  $region1: #{tpu_custom_call.1} parent=0
    #allocation2 [shape = 'u8[8192]{0}', space=vmem, size = 0x2000, scoped, tag = 'input window, operand 0, single buffered']
    #allocation3 [shape = 's32[1]{0}', space=sflag, size = 0x4, scoped, tag = 'scoped memory for tpu_custom_call.1']
    #allocation4 [shape = 's32[1]{0}', space=sflag, size = 0x4, scoped, tag = 'scoped memory for tpu_custom_call.1']
    #allocation5 [shape = 'u8[8192]{0}', space=vmem, size = 0x2000, scoped, tag = 'input window, operand 1, single buffered']
    #allocation6 [shape = 's32[1]{0}', space=sflag, size = 0x4, scoped, tag = 'scoped memory for tpu_custom_call.1']
    #allocation7 [shape = 'u8[4096]{0}', space=vmem, size = 0x1000, scoped, tag = 'output window, operand 0, single buffered']
    %8 = vsyncpa [#allocation3], 0
    %9 = vsyncpa [#allocation6], 0
    %10 = vsyncpa [#allocation4], 0
    // Predicated region
    $region2: #{tpu_custom_call.1} parent=1 // pred_check
      _
    $region3: #{tpu_custom_call.1} parent=1 // pred_check_branch
      %12 = sbr.rel (0) target = $region5
    $region4: #{tpu_custom_call.1} parent=1 // pred_region
      %s14 = ssub.s32 256, 256
      %15 = vsyncadd [#allocation3], %s14
      %s16 = sshll.u32 [#allocation2], 4
      %s17 = int_to_ptr.vmem [resolvable:$true] %s16
      %22 = dma.hbm_to_vmem [thread:$0]  %s0, 256, %s17, [#allocation3], 128, 128, 8
    $region5: #{tpu_custom_call.1} parent=1 // pred_fallthru
      _
    // Predicated region
    $region6: #{tpu_custom_call.1} parent=1 // pred_check
      _
    $region7: #{tpu_custom_call.1} parent=1 // pred_check_branch
      %24 = sbr.rel (0) target = $region9
    $region8: #{tpu_custom_call.1} parent=1 // pred_region
      %s26 = ssub.s32 256, 256
      %27 = vsyncadd [#allocation6], %s26
      %s28 = sshll.u32 [#allocation5], 4
      %s29 = int_to_ptr.vmem [resolvable:$true] %s28
      %34 = dma.hbm_to_vmem [thread:$0]  %s1, 256, %s29, [#allocation6], 64, 64, 4
    $region9: #{tpu_custom_call.1} parent=1 // pred_fallthru
      _
    // Predicated region
    $region10: #{tpu_custom_call.1} parent=1 // pred_check
      _
    $region11: #{tpu_custom_call.1} parent=1 // pred_check_branch
      %36 = sbr.rel (0) target = $region13
    $region12: #{tpu_custom_call.1} parent=1 // pred_region
      _
    $region13: #{tpu_custom_call.1} parent=1 // pred_fallthru
      _
    // Predicated region
    $region14: #{tpu_custom_call.1} parent=1 // pred_check
      _
    $region15: #{tpu_custom_call.1} parent=1 // pred_check_branch
      %38 = sbr.rel (0) target = $region17
    $region16: #{tpu_custom_call.1} parent=1 // pred_region
      %39 = dma.done [#allocation3], 256
    $region17: #{tpu_custom_call.1} parent=1 // pred_fallthru
      _
    // Predicated region
    $region18: #{tpu_custom_call.1} parent=1 // pred_check
      _
    $region19: #{tpu_custom_call.1} parent=1 // pred_check_branch
      %41 = sbr.rel (0) target = $region21
    $region20: #{tpu_custom_call.1} parent=1 // pred_region
      %42 = dma.done [#allocation6], 256
    $region21: #{tpu_custom_call.1} parent=1 // pred_fallthru
      _
    %v44 = vld [vmem:[#allocation2] sm:$0xff]
    %v45 = vld [vmem:[#allocation2 + $0x8] sm:$0xff]
    %v46 = vpack.c.bf16 %v45, %v44
    %v47 = vld [vmem:[#allocation5] sm:$0xf]
    %v48 = vld [vmem:[#allocation5 + $0x4] sm:$0xf]
    %v49 = vld [vmem:[#allocation5 + $0x8] sm:$0xf]
    %v50 = vld [vmem:[#allocation5 + $0xc] sm:$0xf]
    %v51 = vld [vmem:[%s2] sm:$0x1]
    %v53 = vlaneseq
    %v54 = vshrl.u32 %v53, 7
    %v55 = vsub.s32 0, %v54
    %v56 = vrot.slane %v51, %v55
    %v62 = vunpack.c.l.b16 %v47
    %v63 = vunpack.c.l.b16 %v48
    %v64 = vunpack.c.l.b16 %v49
    %v65 = vunpack.c.l.b16 %v50
    %v66 = vpack.c.b16 %v63, %v62
    %v67 = vpack.c.b16 %v65, %v64
    %vm70 = vcmask 261120
    %v72 = vsel %vm70, %v46, 0
    %74 = vmatprep.subr.bf16.mxu0 0
    %75 = vmatpush1.bf16.msra.mxu0 0
    %76 = vmatprep.subr.bf16.mxu0 0
    %77 = vmatpush1.bf16.msra.mxu0 0
    %78 = vmatprep.subr.bf16.mxu0 0
    %79 = vmatpush1.bf16.msra.mxu0 0
    %80 = vmatprep.subr.bf16.mxu0 0
    %81 = vmatpush1.bf16.msra.mxu0 0
    %82 = vmatprep.subr.bf16.mxu0 0
    %83 = vmatpush1.bf16.msra.mxu0 0
    %84 = vmatprep.subr.bf16.mxu0 0
    %85 = vmatpush1.bf16.msra.mxu0 0
    %86 = vmatprep.subr.bf16.mxu0 0
    %87 = vmatpush1.bf16.msra.mxu0 %v67
    %88 = vmatprep.subr.bf16.mxu0 0
    %89 = vmatpush1.bf16.msra.mxu0 %v66
    %90 = vmatprep.subr.bf16.mxu0 0
    %91 = vmatpush2.bf16.msra.mxu0 0
    %92 = vmatprep.subr.bf16.mxu0 0
    %93 = vmatpush2.bf16.msra.mxu0 0
    %94 = vmatprep.subr.bf16.mxu0 0
    %95 = vmatpush2.bf16.msra.mxu0 0
    %96 = vmatprep.subr.bf16.mxu0 0
    %97 = vmatpush2.bf16.msra.mxu0 0
    %98 = vmatprep.subr.bf16.mxu0 0
    %99 = vmatpush2.bf16.msra.mxu0 0
    %100 = vmatprep.subr.bf16.mxu0 0
    %101 = vmatpush2.bf16.msra.mxu0 0
    %102 = vmatprep.subr.bf16.mxu0 0
    %103 = vmatpush2.bf16.msra.mxu0 0
    %104 = vmatprep.subr.bf16.mxu0 0
    %105 = vmatpush2.bf16.msra.mxu0 0
    %106 = vmatprep.mubr.bf16.mxu0 0
    %107 = vmatmul.mubr.bf16.gmra.mxu0 %v72
    %v108 = vpop.f32.mrf.mxu0
    %v109 = vadd.f32 %v56, %v108
    %v110 = vpop.f32.mrf.mxu0
    %v111 = vpop.f32.mrf.mxu0
    %v112 = vadd.f32 %v56, %v111
    %v113 = vpop.f32.mrf.mxu0
    %114 = vdwg.mxu0
    %v115 = vpack.c.bf16 %v112, %v109
    %v117 = vunpack.c.l.b16 %v115
    %v118 = vunpack.c.h.b16 %v115
    %v119 = vpack.c.b16 %v117, %v117
    %v120 = vpack.c.b16 %v118, %v118
    %vm123 = vcmask 781312
    %124 = vst.msk [vmem:[#allocation7] sm:$0xf] %vm123, %v119
    %125 = vst.msk [vmem:[#allocation7 + $0x4] sm:$0xf] %vm123, %v120
    // Predicated region
    $region22: #{tpu_custom_call.1} parent=1 // pred_check
      _
    $region23: #{tpu_custom_call.1} parent=1 // pred_check_branch
      %127 = sbr.rel (0) target = $region25
    $region24: #{tpu_custom_call.1} parent=1 // pred_region
      %s129 = ssub.s32 128, 128
      %130 = vsyncadd [#allocation4], %s129
      %s131 = sshll.u32 [#allocation7], 4
      %s132 = int_to_ptr.vmem [resolvable:$true] %s131
      %137 = dma.vmem_to_hbm [thread:$0]  %s132, 128, %s3, [#allocation4], 64, 64, 4
    $region25: #{tpu_custom_call.1} parent=1 // pred_fallthru
      _
    // Predicated region
    $region26: #{tpu_custom_call.1} parent=1 // pred_check
      _
    $region27: #{tpu_custom_call.1} parent=1 // pred_check_branch
      %139 = sbr.rel (0) target = $region29
    $region28: #{tpu_custom_call.1} parent=1 // pred_region
      %140 = dma.done [#allocation4], 128
    $region29: #{tpu_custom_call.1} parent=1 // pred_fallthru
      _
    %141 = vsyncpa [#allocation3], 1
    %142 = vsyncpa [#allocation6], 1
    %143 = vsyncpa [#allocation4], 1

</llo_original>
